<compile_context>
chip_gen: v5e
topology: v5e:2x2
jax: 0.10.0
libtpu: 0.0.40
codegen_flags: <defaults>
</compile_context>

<pallas_src>
import jax
import jax.numpy as jnp
from jax.experimental import pallas as pl
from jax.experimental.pallas import tpu as pltpu


# ---------------------------------------------------------------------------
# Kernel
# ---------------------------------------------------------------------------
def _rgcn_kernel(tbl_ref, adj_ref, h_ref, norm_ref, bias_ref, o_ref):
    # Grid: (dst_tile [parallel], relation [arbitrary, reduction -> last]).
    d = pl.program_id(0)
    r = pl.program_id(1)
    num_rels = pl.num_programs(1)

    @pl.when(r == 0)
    def _init():
        o_ref[...] = jnp.zeros_like(o_ref)

    # Skip MXU work for (dst-tile, relation) blocks with no edges; the remap
    # table also made the adjacency DMA for such blocks a no-op.
    @pl.when(tbl_ref[d, r] == r)
    def _accumulate():
        # adj_ref: (tile_d, n_p) bf16 edge counts; h_ref: (n_p, fout_p) bf16.
        o_ref[...] += jnp.dot(adj_ref[...], h_ref[...],
                              preferred_element_type=jnp.float32)

    @pl.when(r == num_rels - 1)
    def _finalize():
        # Per-destination normalizer applied once in f32, then bias + relu.
        # dropout(p=0.0) is the identity.
        o_ref[...] = jnp.maximum(o_ref[...] * norm_ref[...] + bias_ref[...], 0.0)


# ---------------------------------------------------------------------------
# One-time graph preparation (cache across layers / training steps)
# ---------------------------------------------------------------------------
def prepare_graph(src, dst, etype, dst_norm, num_nodes, num_rels, *, tile_d=256):
    """Build the padded low-precision adjacency, the per-destination normalizer
    column and the block-sparsity remap table. Done once per (static) graph."""
    n = int(num_nodes)

    # dst-tile size: multiple of 128 when possible (MXU M dim), else mult. of 8.
    n_ceil128 = ((n + 127) // 128) * 128
    tile_d = min(int(tile_d), n_ceil128)
    if tile_d >= 128:
        tile_d = (tile_d // 128) * 128
    else:
        tile_d = max(8, ((tile_d + 7) // 8) * 8)
    n_p = ((n + tile_d - 1) // tile_d) * tile_d
    n_tiles_d = n_p // tile_d

    # Dense per-relation edge-COUNT adjacency adj[r, dst, src]; small integer
    # counts are exact in bf16. The normalizer is NOT baked in here.
    adj = jnp.zeros((num_rels, n_p, n_p), jnp.float32)
    adj = adj.at[etype, dst, src].add(1.0)
    adj_b = adj.astype(jnp.bfloat16)

    # Per-destination normalizer column (f32, applied in the kernel finalize).
    norm_b = jnp.zeros((n_p, 1), jnp.float32).at[:n, 0].set(dst_norm)

    # Block-sparsity remap table: eff[d, r] = r if block (d, r) has edges,
    # otherwise the last previously-fetched relation index (so the adjacency
    # DMA for the empty block is skipped and the kernel skips its matmul).
    nz = (adj != 0).reshape(num_rels, n_tiles_d, tile_d, n_p).any(axis=(2, 3)).T
    prev = jnp.zeros((n_tiles_d,), jnp.int32)
    cols = []
    for r in range(num_rels):
        cur = jnp.where(nz[:, r], jnp.int32(r), prev)
        cols.append(cur)
        prev = cur
    eff_tbl = jnp.stack(cols, axis=1).astype(jnp.int32)        # (n_tiles_d, R)

    return {"adj_b": adj_b, "norm_b": norm_b, "eff_tbl": eff_tbl}


def _vmem_limit_bytes():
    """~75% of the chip's VMEM, clamped: ~96 MiB on v5e/v6e, ~48 MiB on v7x."""
    cap = 64 << 20
    try:
        info = pltpu.get_tpu_info()
        cap = int(getattr(info, "vmem_capacity_bytes", cap) or cap)
    except Exception:
        pass
    return max(32 << 20, min((cap * 3) // 4, 100 << 20))


# ---------------------------------------------------------------------------
# Forward pass (jit this; graph dict comes from prepare_graph)
# ---------------------------------------------------------------------------
def egl_rel_graph_conv(x, basis, w_comp, h_bias, graph):
    """x: (N, in_feat) f32, basis: (num_bases, in_feat, out_feat) f32,
    w_comp: (num_rels, num_bases) f32, h_bias: (out_feat,) f32,
    graph: output of prepare_graph()."""
    adj_b = graph["adj_b"]            # (R, n_p, n_p) bf16 edge counts
    norm_b = graph["norm_b"]          # (n_p, 1) f32 per-dst normalizer
    eff_tbl = graph["eff_tbl"]        # (n_tiles_d, R) int32 remap table

    num_rels, n_p, _ = adj_b.shape
    n_tiles_d = eff_tbl.shape[0]
    tile_d = n_p // n_tiles_d
    n, fin = x.shape
    fout = basis.shape[-1]
    fout_p = ((fout + 127) // 128) * 128

    # Basis decomposition + per-relation feature transform, hoisted out of the
    # per-dst-tile loop: H[r] = X @ W_r (f32 compute, bf16 for the kernel).
    weight = jnp.einsum('rb,bio->rio', w_comp, basis)            # (R, fin, fout)
    x_p = jnp.zeros((n_p, fin), x.dtype).at[:n, :].set(x)
    h_all = jnp.einsum('ni,rio->rno', x_p, weight)               # (R, n_p, fout)
    h_b = jnp.zeros((num_rels, n_p, fout_p), jnp.bfloat16)
    h_b = h_b.at[:, :, :fout].set(h_all.astype(jnp.bfloat16))

    bias_b = jnp.zeros((1, fout_p), jnp.float32).at[0, :fout].set(h_bias)

    grid = (n_tiles_d, num_rels)      # (dst tiles [parallel], rels [arbitrary])

    out_p = pl.pallas_call(
        _rgcn_kernel,
        out_shape=jax.ShapeDtypeStruct((n_p, fout_p), jnp.float32),
        grid_spec=pltpu.PrefetchScalarGridSpec(
            num_scalar_prefetch=1,
            grid=grid,
            in_specs=[
                # A_r dst tile (counts). Empty blocks are remapped to the
                # previously fetched block index -> their DMA is skipped.
                pl.BlockSpec((None, tile_d, n_p),
                             lambda d, r, tbl: (tbl[d, r], d, 0)),
                # H_r = X @ W_r (leading relation dim squeezed).
                pl.BlockSpec((None, n_p, fout_p), lambda d, r, tbl: (r, 0, 0)),
                # Per-destination normalizer column.
                pl.BlockSpec((tile_d, 1), lambda d, r, tbl: (d, 0)),
                # Bias row.
                pl.BlockSpec((1, fout_p), lambda d, r, tbl: (0, 0)),
            ],
            # Same out block across the relation (last) axis -> VMEM-resident
            # f32 accumulator, written back once per dst tile.
            out_specs=pl.BlockSpec((tile_d, fout_p), lambda d, r, tbl: (d, 0)),
        ),
        compiler_params=pltpu.CompilerParams(
            dimension_semantics=("parallel", "arbitrary"),
            vmem_limit_bytes=_vmem_limit_bytes()),
    )(eff_tbl, adj_b, h_b, norm_b, bias_b)

    return out_p[:n, :fout]


# ---------------------------------------------------------------------------
# Demo / correctness check
# ---------------------------------------------------------------------------
def _reference(x, basis, w_comp, h_bias, adj_norm):
    weight = jnp.einsum('rb,bio->rio', w_comp, basis)
    h = jnp.einsum('ni,rio->rno', x, weight)
    out = jnp.einsum('rdn,rno->do', adj_norm, h)
    return jnp.maximum(out + h_bias[None, :], 0.0)


if __name__ == "__main__":
    # Small synthetic RGCN instance.
    num_nodes = 128
    in_feat = 32
    out_feat = 16
    num_rels = 4
    num_bases = 2          # num_bases < num_rels -> exercise basis decomposition
    num_edges = 512

    key = jax.random.PRNGKey(0)
    k_x, k_w, k_c, k_src, k_dst, k_et = jax.random.split(key, 6)

    # Deterministic parameter init (xavier-uniform-like with relu gain sqrt(2)).
    gain = jnp.sqrt(2.0)
    b_w = gain * jnp.sqrt(6.0 / (in_feat + out_feat))
    basis = jax.random.uniform(k_w, (num_bases, in_feat, out_feat),
                               jnp.float32, -b_w, b_w)
    b_c = gain * jnp.sqrt(6.0 / (num_rels + num_bases))
    w_comp = jax.random.uniform(k_c, (num_rels, num_bases),
                                jnp.float32, -b_c, b_c)
    h_bias = jnp.zeros((out_feat,), jnp.float32)   # nn.init.zeros_

    # Node features and a random multigraph with edge types; standard RGCN
    # normalizer norm_e = 1 / in_degree(dst_e) (depends only on the destination).
    x = jax.random.normal(k_x, (num_nodes, in_feat), jnp.float32)
    src = jax.random.randint(k_src, (num_edges,), 0, num_nodes)
    dst = jax.random.randint(k_dst, (num_edges,), 0, num_nodes)
    etype = jax.random.randint(k_et, (num_edges,), 0, num_rels)
    in_deg = jnp.zeros((num_nodes,), jnp.float32).at[dst].add(1.0)
    dst_norm = 1.0 / jnp.maximum(in_deg, 1.0)                   # (N,)

    # One-time graph preparation (cached across layers / steps).
    graph = prepare_graph(src, dst, etype, dst_norm, num_nodes, num_rels,
                          tile_d=256)

    fwd = jax.jit(egl_rel_graph_conv)
    out = fwd(x, basis, w_comp, h_bias, graph)
    out = jax.block_until_ready(out)

    # Reference with the normalizer baked into a dense f32 adjacency.
    adj_norm = jnp.zeros((num_rels, num_nodes, num_nodes), jnp.float32)
    adj_norm = adj_norm.at[etype, dst, src].add(dst_norm[dst])
    ref = _reference(x, basis, w_comp, h_bias, adj_norm)

    assert out.shape == (num_nodes, out_feat)
    # bf16 kernel operands (f32 accumulation + f32 finalize scale) vs f32 ref.
    assert jnp.allclose(out, ref, atol=5e-2, rtol=5e-2)
    print("KERNEL_OK")
</pallas_src>

<mosaic_0001>
module attributes {stable_mosaic.version = 11 : i64} {
  func.func @_rgcn_kernel(%arg0: i32, %arg1: i32, %arg2: memref<1x4xi32, #tpu.memory_space<smem>>, %arg3: memref<1x128x128xbf16, #tpu.memory_space<vmem>>, %arg4: memref<1x128x128xbf16, #tpu.memory_space<vmem>>, %arg5: memref<128x1xf32, #tpu.memory_space<vmem>>, %arg6: memref<1x128xf32, #tpu.memory_space<vmem>>, %arg7: memref<128x128xf32, #tpu.memory_space<vmem>>) attributes {dimension_semantics = [#tpu.dimension_semantics<parallel>, #tpu.dimension_semantics<arbitrary>], iteration_bounds = array<i64: 1, 4>, scalar_prefetch = 1 : i64, scratch_operands = 0 : i64, tpu.core_type = #tpu.core_type<tc>, window_params = [{transform_indices = @transform_0, window_bounds = array<i64: 1, 128, 128>}, {transform_indices = @transform_1, window_bounds = array<i64: 1, 128, 128>}, {transform_indices = @transform_2, window_bounds = array<i64: 128, 1>}, {pipeline_mode = #tpu.pipeline_mode<synchronous>, transform_indices = @transform_3, window_bounds = array<i64: 1, 128>}, {transform_indices = @transform_4, window_bounds = array<i64: 128, 128>}]} {
    %c0_i32 = arith.constant 0 : i32
    %0 = arith.cmpi eq, %arg1, %c0_i32 : i32
    %1 = arith.extui %0 : i1 to i32
    %c0_i32_0 = arith.constant 0 : i32
    %2 = arith.cmpi ne, %1, %c0_i32_0 : i32
    scf.if %2 {
      %cst = arith.constant 0.000000e+00 : f32
      %12 = vector.broadcast %cst : f32 to vector<128x128xf32>
      %c0 = arith.constant 0 : index
      %c0_3 = arith.constant 0 : index
      %13 = vector.load %arg7[%c0, %c0_3] : memref<128x128xf32, #tpu.memory_space<vmem>>, vector<128x128xf32>
      tpu.vector_store %arg7[%c0, %c0_3], %12 {strides = array<i32>} : memref<128x128xf32, #tpu.memory_space<vmem>>, vector<128x128xf32>,
    } else {
    }
    %3 = arith.index_cast %arg0 : i32 to index
    %4 = arith.index_cast %arg1 : i32 to index
    %5 = memref.load %arg2[%3, %4] : memref<1x4xi32, #tpu.memory_space<smem>>
    %6 = arith.cmpi eq, %5, %arg1 : i32
    %7 = arith.extui %6 : i1 to i32
    %c0_i32_1 = arith.constant 0 : i32
    %8 = arith.cmpi ne, %7, %c0_i32_1 : i32
    scf.if %8 {
      %c0 = arith.constant 0 : index
      %c0_3 = arith.constant 0 : index
      %12 = vector.load %arg7[%c0, %c0_3] : memref<128x128xf32, #tpu.memory_space<vmem>>, vector<128x128xf32>
      %c0_4 = arith.constant 0 : index
      %c0_5 = arith.constant 0 : index
      %c0_6 = arith.constant 0 : index
      %13 = vector.load %arg3[%c0_4, %c0_5, %c0_6] : memref<1x128x128xbf16, #tpu.memory_space<vmem>>, vector<1x128x128xbf16>
      %14 = vector.shape_cast %13 : vector<1x128x128xbf16> to vector<128x128xbf16>
      %c0_7 = arith.constant 0 : index
      %c0_8 = arith.constant 0 : index
      %c0_9 = arith.constant 0 : index
      %15 = vector.load %arg4[%c0_7, %c0_8, %c0_9] : memref<1x128x128xbf16, #tpu.memory_space<vmem>>, vector<1x128x128xbf16>
      %16 = vector.shape_cast %15 : vector<1x128x128xbf16> to vector<128x128xbf16>
      %cst = arith.constant dense<0.000000e+00> : vector<128x128xf32>
      %17 = tpu.matmul %14, %16, %cst {dimension_numbers = #tpu.dot_dimension_numbers<[1], [0], [0], [1], [0, 0, 1, 1], [], []>} : vector<128x128xbf16>, vector<128x128xbf16>, vector<128x128xf32> -> vector<128x128xf32>
      %18 = arith.addf %12, %17 : vector<128x128xf32>
      %c0_10 = arith.constant 0 : index
      %c0_11 = arith.constant 0 : index
      %19 = vector.load %arg7[%c0_10, %c0_11] : memref<128x128xf32, #tpu.memory_space<vmem>>, vector<128x128xf32>
      tpu.vector_store %arg7[%c0_10, %c0_11], %18 {strides = array<i32>} : memref<128x128xf32, #tpu.memory_space<vmem>>, vector<128x128xf32>,
    } else {
    }
    %c3_i32 = arith.constant 3 : i32
    %9 = arith.cmpi eq, %arg1, %c3_i32 : i32
    %10 = arith.extui %9 : i1 to i32
    %c0_i32_2 = arith.constant 0 : i32
    %11 = arith.cmpi ne, %10, %c0_i32_2 : i32
    scf.if %11 {
      %c0 = arith.constant 0 : index
      %c0_3 = arith.constant 0 : index
      %12 = vector.load %arg7[%c0, %c0_3] : memref<128x128xf32, #tpu.memory_space<vmem>>, vector<128x128xf32>
      %c0_4 = arith.constant 0 : index
      %c0_5 = arith.constant 0 : index
      %13 = vector.load %arg5[%c0_4, %c0_5] : memref<128x1xf32, #tpu.memory_space<vmem>>, vector<128x1xf32>
      %14 = vector.broadcast %13 : vector<128x1xf32> to vector<128x128xf32>
      %15 = arith.mulf %12, %14 : vector<128x128xf32>
      %c0_6 = arith.constant 0 : index
      %c0_7 = arith.constant 0 : index
      %16 = vector.load %arg6[%c0_6, %c0_7] : memref<1x128xf32, #tpu.memory_space<vmem>>, vector<1x128xf32>
      %17 = vector.broadcast %16 : vector<1x128xf32> to vector<128x128xf32>
      %18 = arith.addf %15, %17 : vector<128x128xf32>
      %cst = arith.constant 0.000000e+00 : f32
      %19 = vector.broadcast %cst : f32 to vector<128x128xf32>
      %20 = arith.maximumf %18, %19 : vector<128x128xf32>
      %c0_8 = arith.constant 0 : index
      %c0_9 = arith.constant 0 : index
      %21 = vector.load %arg7[%c0_8, %c0_9] : memref<128x128xf32, #tpu.memory_space<vmem>>, vector<128x128xf32>
      tpu.vector_store %arg7[%c0_8, %c0_9], %20 {strides = array<i32>} : memref<128x128xf32, #tpu.memory_space<vmem>>, vector<128x128xf32>,
    } else {
    }
    return
  }
  func.func @transform_0(%arg0: i32, %arg1: i32, %arg2: memref<1x4xi32, #tpu.memory_space<smem>>) -> (i32, i32, i32) {
    %0 = arith.index_cast %arg0 : i32 to index
    %1 = arith.index_cast %arg1 : i32 to index
    %2 = memref.load %arg2[%0, %1] : memref<1x4xi32, #tpu.memory_space<smem>>
    %c0_i32 = arith.constant 0 : i32
    %c0_i32_0 = arith.constant 0 : i32
    return %2, %arg0, %c0_i32 : i32, i32, i32
  }
  func.func @transform_1(%arg0: i32, %arg1: i32, %arg2: memref<1x4xi32, #tpu.memory_space<smem>>) -> (i32, i32, i32) {
    %c0_i32 = arith.constant 0 : i32
    %c0_i32_0 = arith.constant 0 : i32
    %c0_i32_1 = arith.constant 0 : i32
    return %arg1, %c0_i32, %c0_i32_0 : i32, i32, i32
  }
  func.func @transform_2(%arg0: i32, %arg1: i32, %arg2: memref<1x4xi32, #tpu.memory_space<smem>>) -> (i32, i32) {
    %c0_i32 = arith.constant 0 : i32
    %c0_i32_0 = arith.constant 0 : i32
    return %arg0, %c0_i32 : i32, i32
  }
  func.func @transform_3(%arg0: i32, %arg1: i32, %arg2: memref<1x4xi32, #tpu.memory_space<smem>>) -> (i32, i32) {
    %c0_i32 = arith.constant 0 : i32
    %c0_i32_0 = arith.constant 0 : i32
    %c0_i32_1 = arith.constant 0 : i32
    return %c0_i32, %c0_i32_0 : i32, i32
  }
  func.func @transform_4(%arg0: i32, %arg1: i32, %arg2: memref<1x4xi32, #tpu.memory_space<smem>>) -> (i32, i32) {
    %c0_i32 = arith.constant 0 : i32
    %c0_i32_0 = arith.constant 0 : i32
    return %arg0, %c0_i32 : i32, i32
  }
}

</mosaic_0001>

<llo_original>
// kernel: egl_rel_graph_conv.1
$region0: #{egl_rel_graph_conv.1}
  #allocation0 [shape = 'u32[]', space=smem, size = 0x4, offset = 0x4, fixed_abs, tag = 'smem constant byte address 0x4 - core index']
  #allocation1 [shape = 'u32[72,128]{1,0:T(1,128)}', space=vmem, size = 0x9000, scoped, tag = 'internal scratch']
  #allocation2 [shape = 's32[1]{0}', space=sflag, size = 0x4, scoped, tag = 'scoped memory for egl_rel_graph_conv.1']
  #allocation3 [shape = 'u8[512]{0}', space=smem, size = 0x200, scoped, tag = 'prefetched SMEM operand 0']
  %s0 = inlined_call_operand.vmem [shape: s32[1,4], index: 0, kind: input, shape index: {}]
  %s1 = inlined_call_operand.vmem [shape: bf16[4,128,128], index: 1, kind: input, shape index: {}]
  %s2 = inlined_call_operand.vmem [shape: bf16[4,128,128], index: 2, kind: input, shape index: {}]
  %s3 = inlined_call_operand.vmem [shape: f32[128,1], index: 3, kind: input, shape index: {}]
  %s4 = inlined_call_operand.vmem [shape: f32[1,128], index: 4, kind: input, shape index: {}]
  %s5 = inlined_call_operand.vmem [shape: f32[128,128], index: 5, kind: output, shape index: {}]
  %s6 = sld [smem:[#allocation0]]
  $region61: #{egl_rel_graph_conv.1} parent=0
    _
  %s8 = ssub.s32 1, %s6
  %s9 = scalar_select 0, %s8, %s6
  %s11 = sshll.u32 %s0, 4
  %s12 = int_to_ptr.vmem [resolvable:$true] %s11
  %14 = dma.vmem_to_smem %s12, 16, [#allocation3], [#allocation2]
  %16 = dma.done [#allocation2], 16
  %17 = sfence
  loop: start=0, step=1, limit=6
  $region2: #{egl_rel_graph_conv.1} parent=0 // loop_pre_header
    _
  $region3: #{egl_rel_graph_conv.1} parent=0 // loop_header
    %s19 = sphi 0, %s23
    %p20 = scmp.ge.s32.totalorder %s19, 6
    %s26 = sphi 0, %s38
    %s27 = sphi 0, %s34
    %s28 = sphi 0, %s26
    %s29 = sphi 0, %s27
    %s30 = sphi 0, %s28
    %s31 = sphi 0, %s29
    %s59 = sphi 0, %s61
    %s62 = sphi 0, %s59
    %s63 = sphi 0, %s62
    %s79 = sphi 0, %s63
    %s85 = sphi 0, %s87
    %s88 = sphi 0, %s85
    %s89 = sphi 0, %s88
    %s105 = sphi 0, %s89
    %s111 = sphi 0, %s113
    %s114 = sphi 0, %s111
    %s115 = sphi 0, %s114
    %s131 = sphi 0, %s115
    %s135 = sphi 0, %s135
    %s137 = sphi 0, %s135
    %s138 = sphi 0, %s137
    %s152 = sphi 0, %s138
    %s158 = sphi 0, %s160
    %s161 = sphi 0, %s158
    %s162 = sphi 0, %s161
    %s178 = sphi 0, %s162
  $region4: #{egl_rel_graph_conv.1} parent=0 // loop_header_branch
    %22 = sbr.rel (%p20) target = $region8
  $region5: #{egl_rel_graph_conv.1} parent=0 // loop_body
    %s24 = ssub.s32 %s19, 1
    %s25 = ssub.s32 %s19, 2
    %s32 = sadd.s32 1, %s27
    %p33 = scmp.ge.s32.totalorder %s32, 4
    %s34 = scalar_select %p33, 0, %s32
    %s35 = sadd.s32 1, %s26
    %s36 = scalar_select %p33, %s35, %s26
    %p37 = scmp.ge.s32.totalorder %s36, 1
    %s38 = scalar_select %p37, 0, %s36
    %s39 = sshra.s32 %s27, 7
    %s40 = sand.u32 %s27, 127
    %s41 = sadd.s32 %s39, %s26
    %s42 = smul.u32 %s41, 128
    %s43 = sshra.s32 %s27, 7
    %s44 = sand.u32 %s27, 127
    %s45 = sadd.s32 %s42, %s44
    %s46 = sld [smem:[#allocation3 + %s45]]
    %s47 = sshra.s32 %s34, 7
    %s48 = sand.u32 %s34, 127
    %s49 = sadd.s32 %s47, %s38
    %s50 = smul.u32 %s49, 128
    %s51 = sshra.s32 %s34, 7
    %s52 = sand.u32 %s34, 127
    %s53 = sadd.s32 %s50, %s52
    %s54 = sld [smem:[#allocation3 + %s53]]
    %s55 = ssub.s32 %s46, %s54
    %s56 = ssub.s32 %s26, %s38
    %s57 = sor.u32 %s55, %s56
    %p58 = scmp.eq.s32.totalorder %s57, 0
    %s60 = sadd.s32 %s59, 1
    %s61 = scalar_select %p58, %s59, %s60
    %p64 = pneg %p58
    %p65 = scmp.eq.s32.totalorder %s19, 3
    %p66 = por %p64, %p65
    %p67 = scmp.ne.s32.totalorder %s59, %s62
    %p68 = scmp.eq.s32.totalorder %s19, 0
    %p69 = por %p67, %p68
    %p70 = scmp.ne.s32.totalorder %s59, %s62
    %p71 = scmp.eq.s32.totalorder %s24, 3
    %p72 = por %p70, %p71
    %p73 = scmp.ne.s32.totalorder %s62, %s63
    %p74 = scmp.eq.s32.totalorder %s24, 0
    %p75 = por %p73, %p74
    %p76 = scmp.ne.s32.totalorder %s62, %s63
    %p77 = scmp.eq.s32.totalorder %s25, 3
    %p78 = por %p76, %p77
    %p80 = scmp.ne.s32.totalorder %s63, %s79
    %p81 = scmp.eq.s32.totalorder %s25, 0
    %p82 = por %p80, %p81
    %s83 = ssub.s32 %s27, %s34
    %p84 = scmp.eq.s32.totalorder %s83, 0
    %s86 = sadd.s32 %s85, 1
    %s87 = scalar_select %p84, %s85, %s86
    %p90 = pneg %p84
    %p91 = scmp.eq.s32.totalorder %s19, 3
    %p92 = por %p90, %p91
    %p93 = scmp.ne.s32.totalorder %s85, %s88
    %p94 = scmp.eq.s32.totalorder %s19, 0
    %p95 = por %p93, %p94
    %p96 = scmp.ne.s32.totalorder %s85, %s88
    %p97 = scmp.eq.s32.totalorder %s24, 3
    %p98 = por %p96, %p97
    %p99 = scmp.ne.s32.totalorder %s88, %s89
    %p100 = scmp.eq.s32.totalorder %s24, 0
    %p101 = por %p99, %p100
    %p102 = scmp.ne.s32.totalorder %s88, %s89
    %p103 = scmp.eq.s32.totalorder %s25, 3
    %p104 = por %p102, %p103
    %p106 = scmp.ne.s32.totalorder %s89, %s105
    %p107 = scmp.eq.s32.totalorder %s25, 0
    %p108 = por %p106, %p107
    %s109 = ssub.s32 %s26, %s38
    %p110 = scmp.eq.s32.totalorder %s109, 0
    %s112 = sadd.s32 %s111, 1
    %s113 = scalar_select %p110, %s111, %s112
    %p116 = pneg %p110
    %p117 = scmp.eq.s32.totalorder %s19, 3
    %p118 = por %p116, %p117
    %p119 = scmp.ne.s32.totalorder %s111, %s114
    %p120 = scmp.eq.s32.totalorder %s19, 0
    %p121 = por %p119, %p120
    %p122 = scmp.ne.s32.totalorder %s111, %s114
    %p123 = scmp.eq.s32.totalorder %s24, 3
    %p124 = por %p122, %p123
    %p125 = scmp.ne.s32.totalorder %s114, %s115
    %p126 = scmp.eq.s32.totalorder %s24, 0
    %p127 = por %p125, %p126
    %p128 = scmp.ne.s32.totalorder %s114, %s115
    %p129 = scmp.eq.s32.totalorder %s25, 3
    %p130 = por %p128, %p129
    %p132 = scmp.ne.s32.totalorder %s115, %s131
    %p133 = scmp.eq.s32.totalorder %s25, 0
    %p134 = por %p132, %p133
    %s136 = sadd.s32 %s135, 1
    %p139 = scmp.eq.s32.totalorder %s19, 3
    %p140 = scmp.ne.s32.totalorder %s135, %s137
    %p141 = scmp.eq.s32.totalorder %s19, 0
    %p142 = por %p140, %p141
    %p143 = scmp.ne.s32.totalorder %s135, %s137
    %p144 = scmp.eq.s32.totalorder %s24, 3
    %p145 = por %p143, %p144
    %p146 = scmp.ne.s32.totalorder %s137, %s138
    %p147 = scmp.eq.s32.totalorder %s24, 0
    %p148 = por %p146, %p147
    %p149 = scmp.ne.s32.totalorder %s137, %s138
    %p150 = scmp.eq.s32.totalorder %s25, 3
    %p151 = por %p149, %p150
    %p153 = scmp.ne.s32.totalorder %s138, %s152
    %p154 = scmp.eq.s32.totalorder %s25, 0
    %p155 = por %p153, %p154
    %s156 = ssub.s32 %s26, %s38
    %p157 = scmp.eq.s32.totalorder %s156, 0
    %s159 = sadd.s32 %s158, 1
    %s160 = scalar_select %p157, %s158, %s159
    %p163 = pneg %p157
    %p164 = scmp.eq.s32.totalorder %s19, 3
    %p165 = por %p163, %p164
    %p166 = scmp.ne.s32.totalorder %s158, %s161
    %p167 = scmp.eq.s32.totalorder %s19, 0
    %p168 = por %p166, %p167
    %p169 = scmp.ne.s32.totalorder %s158, %s161
    %p170 = scmp.eq.s32.totalorder %s24, 3
    %p171 = por %p169, %p170
    %p172 = scmp.ne.s32.totalorder %s161, %s162
    %p173 = scmp.eq.s32.totalorder %s24, 0
    %p174 = por %p172, %p173
    %p175 = scmp.ne.s32.totalorder %s161, %s162
    %p176 = scmp.eq.s32.totalorder %s25, 3
    %p177 = por %p175, %p176
    %p179 = scmp.ne.s32.totalorder %s162, %s178
    %p180 = scmp.eq.s32.totalorder %s25, 0
    %p181 = por %p179, %p180
    %p182 = scmp.le.s32.totalorder 1, %s19
    %p183 = scmp.lt.s32.totalorder %s19, 5
    %p184 = pnand %p182, %p183
    %p185 = pneg %p184
    // Predicated region
    $region9: #{egl_rel_graph_conv.1} parent=5 // pred_check
      _
    $region10: #{egl_rel_graph_conv.1} parent=5 // pred_check_branch
      %187 = sbr.rel (%p184) target = $region12
    $region11: #{egl_rel_graph_conv.1} parent=5 // pred_region
      %s188 = ssub.s32 %s19, 1
      // Predicated region
      $region13: #{egl_rel_graph_conv.1} parent=11 // pred_check
        %p189 = pneg %p127
      $region14: #{egl_rel_graph_conv.1} parent=11 // pred_check_branch
        %191 = sbr.rel (%p189) target = $region16
      $region15: #{egl_rel_graph_conv.1} parent=11 // pred_region
        %s192 = smul.u32 16, %s28
        %p193 = scmp.lt.s32.totalorder %s192, 15
        %s194 = scalar_select %p193, %s192, 15
        %s195 = smul.addr %s194, 8
        %s196 = scalar_lea.vmem %s3, %s195
        %s197 = smul.u32 16, %s28
      $region16: #{egl_rel_graph_conv.1} parent=11 // pred_fallthru
        _
      // Predicated region
      $region17: #{egl_rel_graph_conv.1} parent=11 // pred_check
        %p198 = pneg %p148
      $region18: #{egl_rel_graph_conv.1} parent=11 // pred_check_branch
        %200 = sbr.rel (%p198) target = $region20
      $region19: #{egl_rel_graph_conv.1} parent=11 // pred_region
        _
      $region20: #{egl_rel_graph_conv.1} parent=11 // pred_fallthru
        _
    $region12: #{egl_rel_graph_conv.1} parent=5 // pred_fallthru
      _
    %p201 = scmp.lt.s32.totalorder %s19, 4
    // Predicated region
    $region21: #{egl_rel_graph_conv.1} parent=5 // pred_check
      %p202 = pneg %p201
    $region22: #{egl_rel_graph_conv.1} parent=5 // pred_check_branch
      %204 = sbr.rel (%p202) target = $region24
    $region23: #{egl_rel_graph_conv.1} parent=5 // pred_region
      // Predicated region
      $region25: #{egl_rel_graph_conv.1} parent=23 // pred_check
        %p205 = pneg %p69
      $region26: #{egl_rel_graph_conv.1} parent=23 // pred_check_branch
        %207 = sbr.rel (%p205) target = $region28
      $region27: #{egl_rel_graph_conv.1} parent=23 // pred_region
        %s208 = sshra.s32 %s27, 7
        %s209 = sand.u32 %s27, 127
        %s210 = sadd.s32 %s208, %s26
        %s211 = smul.u32 %s210, 128
        %s212 = sshra.s32 %s27, 7
        %s213 = sand.u32 %s27, 127
        %s214 = sadd.s32 %s211, %s213
        %s215 = sld [smem:[#allocation3 + %s214]]
        %s216 = smul.u32 16, %s26
        %p217 = scmp.lt.s32.totalorder %s215, 3
        %s218 = scalar_select %p217, %s215, 3
        %p219 = scmp.lt.s32.totalorder %s216, 15
        %s220 = scalar_select %p219, %s216, 15
        %s221 = smul.addr %s218, 16
        %s222 = sadd.s32 %s220, %s221
        %s223 = smul.addr %s222, 4
        %s224 = scalar_lea.vmem %s1, %s223
        %s225 = sshra.s32 %s27, 7
        %s226 = sand.u32 %s27, 127
        %s227 = sadd.s32 %s225, %s26
        %s228 = smul.u32 %s227, 128
        %s229 = sshra.s32 %s27, 7
        %s230 = sand.u32 %s27, 127
        %s231 = sadd.s32 %s228, %s230
        %s232 = sld [smem:[#allocation3 + %s231]]
        %s233 = smul.u32 16, %s26
      $region28: #{egl_rel_graph_conv.1} parent=23 // pred_fallthru
        _
      // Predicated region
      $region29: #{egl_rel_graph_conv.1} parent=23 // pred_check
        %p234 = pneg %p95
      $region30: #{egl_rel_graph_conv.1} parent=23 // pred_check_branch
        %236 = sbr.rel (%p234) target = $region32
      $region31: #{egl_rel_graph_conv.1} parent=23 // pred_region
        %p237 = scmp.lt.s32.totalorder %s27, 3
        %s238 = scalar_select %p237, %s27, 3
        %s239 = smul.addr %s238, 16
        %s240 = smul.addr %s239, 4
        %s241 = scalar_lea.vmem %s2, %s240
      $region32: #{egl_rel_graph_conv.1} parent=23 // pred_fallthru
        _
    $region24: #{egl_rel_graph_conv.1} parent=5 // pred_fallthru
      _
    %p242 = scmp.le.s32.totalorder 1, %s19
    %p243 = scmp.lt.s32.totalorder %s19, 5
    %p244 = pnand %p242, %p243
    %p245 = pneg %p244
    // Predicated region
    $region33: #{egl_rel_graph_conv.1} parent=5 // pred_check
      _
    $region34: #{egl_rel_graph_conv.1} parent=5 // pred_check_branch
      %247 = sbr.rel (%p244) target = $region36
    $region35: #{egl_rel_graph_conv.1} parent=5 // pred_region
      %s248 = ssub.s32 %s19, 1
      %s249 = sshra.s32 %s29, 7
      %s250 = sand.u32 %s29, 127
      %s251 = sadd.s32 %s249, %s28
      %s252 = smul.u32 %s251, 128
      %s253 = sshra.s32 %s29, 7
      %s254 = sand.u32 %s29, 127
      %s255 = sadd.s32 %s252, %s254
      %s256 = sld [smem:[#allocation3 + %s255]]
      %s257 = smul.u32 16, %s28
      %p258 = scmp.lt.s32.totalorder %s256, 3
      %s259 = scalar_select %p258, %s256, 3
      %p260 = scmp.lt.s32.totalorder %s257, 15
      %s261 = scalar_select %p260, %s257, 15
      %s262 = smul.addr %s259, 16
      %s263 = sadd.s32 %s261, %s262
      %s264 = smul.addr %s263, 4
      %s265 = scalar_lea.vmem %s1, %s264
      %p266 = pneg %p75
      %p267 = pneg %p72
      %p268 = scmp.lt.s32.totalorder %s29, 3
      %s269 = scalar_select %p268, %s29, 3
      %s270 = smul.addr %s269, 16
      %s271 = smul.addr %s270, 4
      %s272 = scalar_lea.vmem %s2, %s271
      %p273 = pneg %p101
      %p274 = pneg %p98
      %s275 = smul.u32 16, %s28
      %p276 = scmp.lt.s32.totalorder %s275, 15
      %s277 = scalar_select %p276, %s275, 15
      %s278 = smul.addr %s277, 8
      %s279 = scalar_lea.vmem %s3, %s278
      %p280 = pneg %p127
      %p281 = pneg %p124
      %p282 = pneg %p148
      %p283 = pneg %p145
      %p284 = pneg %p174
      %p285 = pneg %p171
      %s286 = smul.u32 16, %s28
      %p287 = scmp.lt.s32.totalorder %s286, 15
      %s288 = scalar_select %p287, %s286, 15
      %s289 = smul.addr %s288, 8
      %s290 = scalar_lea.vmem %s5, %s289
      %s291 = sshra.s32 %s29, 7
      %s292 = sand.u32 %s29, 127
      %s293 = sadd.s32 %s291, %s28
      %s294 = smul.u32 %s293, 128
      %s295 = sshra.s32 %s29, 7
      %s296 = sand.u32 %s29, 127
      %s297 = sadd.s32 %s294, %s296
      %s298 = sld [smem:[#allocation3 + %s297]]
      %s299 = smul.u32 16, %s28
      %p300 = scmp.lt.s32.totalorder %s298, 3
      %s301 = scalar_select %p300, %s298, 3
      %p302 = scmp.lt.s32.totalorder %s299, 15
      %s303 = scalar_select %p302, %s299, 15
      %s304 = smul.addr %s301, 16
      %s305 = sadd.s32 %s303, %s304
      %s306 = smul.addr %s305, 4
      %s307 = scalar_lea.vmem %s1, %s306
      %s308 = sshra.s32 %s29, 7
      %s309 = sand.u32 %s29, 127
      %s310 = sadd.s32 %s308, %s28
      %s311 = smul.u32 %s310, 128
      %s312 = sshra.s32 %s29, 7
      %s313 = sand.u32 %s29, 127
      %s314 = sadd.s32 %s311, %s313
      %s315 = sld [smem:[#allocation3 + %s314]]
      %s316 = smul.u32 16, %s28
      %p317 = scmp.lt.s32.totalorder %s29, 3
      %s318 = scalar_select %p317, %s29, 3
      %s319 = smul.addr %s318, 16
      %s320 = smul.addr %s319, 4
      %s321 = scalar_lea.vmem %s2, %s320
      %s322 = smul.u32 16, %s28
      %p323 = scmp.lt.s32.totalorder %s322, 15
      %s324 = scalar_select %p323, %s322, 15
      %s325 = smul.addr %s324, 8
      %s326 = scalar_lea.vmem %s3, %s325
      %s327 = smul.u32 16, %s28
      %s328 = smul.u32 16, %s28
      %p329 = scmp.lt.s32.totalorder %s328, 15
      %s330 = scalar_select %p329, %s328, 15
      %s331 = smul.addr %s330, 8
      %s332 = scalar_lea.vmem %s5, %s331
      %s333 = smul.u32 16, %s28
      %p334 = scmp.eq.s32.totalorder %s29, 0
      // Predicated region
      $region37: #{egl_rel_graph_conv.1} parent=35 // pred_check
        %p335 = pneg %p334
      $region38: #{egl_rel_graph_conv.1} parent=35 // pred_check_branch
        %337 = sbr.rel (%p335) target = $region40
      $region39: #{egl_rel_graph_conv.1} parent=35 // pred_region
        %338 = vst [vmem:[%s332] sm:$0xff] 0.0
        %339 = vst [vmem:[%s332 + $0x8] sm:$0xff] 0.0
        %340 = vst [vmem:[%s332 + $0x10] sm:$0xff] 0.0
        %341 = vst [vmem:[%s332 + $0x18] sm:$0xff] 0.0
        %342 = vst [vmem:[%s332 + $0x20] sm:$0xff] 0.0
        %343 = vst [vmem:[%s332 + $0x28] sm:$0xff] 0.0
        %344 = vst [vmem:[%s332 + $0x30] sm:$0xff] 0.0
        %345 = vst [vmem:[%s332 + $0x38] sm:$0xff] 0.0
        %346 = vst [vmem:[%s332 + $0x40] sm:$0xff] 0.0
        %347 = vst [vmem:[%s332 + $0x48] sm:$0xff] 0.0
        %348 = vst [vmem:[%s332 + $0x50] sm:$0xff] 0.0
        %349 = vst [vmem:[%s332 + $0x58] sm:$0xff] 0.0
        %350 = vst [vmem:[%s332 + $0x60] sm:$0xff] 0.0
        %351 = vst [vmem:[%s332 + $0x68] sm:$0xff] 0.0
        %352 = vst [vmem:[%s332 + $0x70] sm:$0xff] 0.0
        %353 = vst [vmem:[%s332 + $0x78] sm:$0xff] 0.0
      $region40: #{egl_rel_graph_conv.1} parent=35 // pred_fallthru
        _
      %s354 = sshra.s32 %s29, 7
      %s355 = sand.u32 %s29, 127
      %s356 = sadd.s32 %s354, %s28
      %s357 = smul.u32 %s356, 128
      %s358 = sshra.s32 %s29, 7
      %s359 = sand.u32 %s29, 127
      %s360 = sadd.s32 %s357, %s359
      %s361 = sld [smem:[#allocation3 + %s360]]
      %p362 = scmp.eq.s32.totalorder %s361, %s29
      // Predicated region
      $region41: #{egl_rel_graph_conv.1} parent=35 // pred_check
        %p363 = pneg %p362
      $region42: #{egl_rel_graph_conv.1} parent=35 // pred_check_branch
        %365 = sbr.rel (%p363) target = $region44
      $region43: #{egl_rel_graph_conv.1} parent=35 // pred_region
        %v366 = vld [vmem:[%s332] sm:$0xff]
        %v367 = vld [vmem:[%s332 + $0x8] sm:$0xff]
        %v368 = vld [vmem:[%s332 + $0x10] sm:$0xff]
        %v369 = vld [vmem:[%s332 + $0x18] sm:$0xff]
        %v370 = vld [vmem:[%s332 + $0x20] sm:$0xff]
        %v371 = vld [vmem:[%s332 + $0x28] sm:$0xff]
        %v372 = vld [vmem:[%s332 + $0x30] sm:$0xff]
        %v373 = vld [vmem:[%s332 + $0x38] sm:$0xff]
        %v374 = vld [vmem:[%s332 + $0x40] sm:$0xff]
        %v375 = vld [vmem:[%s332 + $0x48] sm:$0xff]
        %v376 = vld [vmem:[%s332 + $0x50] sm:$0xff]
        %v377 = vld [vmem:[%s332 + $0x58] sm:$0xff]
        %v378 = vld [vmem:[%s332 + $0x60] sm:$0xff]
        %v379 = vld [vmem:[%s332 + $0x68] sm:$0xff]
        %v380 = vld [vmem:[%s332 + $0x70] sm:$0xff]
        %v381 = vld [vmem:[%s332 + $0x78] sm:$0xff]
        %v382 = vld [vmem:[%s307] sm:$0xf]
        %v383 = vld [vmem:[%s307 + $0x4] sm:$0xf]
        %v384 = vld [vmem:[%s307 + $0x8] sm:$0xf]
        %v385 = vld [vmem:[%s307 + $0xc] sm:$0xf]
        %v386 = vld [vmem:[%s307 + $0x10] sm:$0xf]
        %v387 = vld [vmem:[%s307 + $0x14] sm:$0xf]
        %v388 = vld [vmem:[%s307 + $0x18] sm:$0xf]
        %v389 = vld [vmem:[%s307 + $0x1c] sm:$0xf]
        %v390 = vld [vmem:[%s307 + $0x20] sm:$0xf]
        %v391 = vld [vmem:[%s307 + $0x24] sm:$0xf]
        %v392 = vld [vmem:[%s307 + $0x28] sm:$0xf]
        %v393 = vld [vmem:[%s307 + $0x2c] sm:$0xf]
        %v394 = vld [vmem:[%s307 + $0x30] sm:$0xf]
        %v395 = vld [vmem:[%s307 + $0x34] sm:$0xf]
        %v396 = vld [vmem:[%s307 + $0x38] sm:$0xf]
        %v397 = vld [vmem:[%s307 + $0x3c] sm:$0xf]
        %v398 = vld [vmem:[%s321] sm:$0xf]
        %v399 = vld [vmem:[%s321 + $0x4] sm:$0xf]
        %v400 = vld [vmem:[%s321 + $0x8] sm:$0xf]
        %v401 = vld [vmem:[%s321 + $0xc] sm:$0xf]
        %v402 = vld [vmem:[%s321 + $0x10] sm:$0xf]
        %v403 = vld [vmem:[%s321 + $0x14] sm:$0xf]
        %v404 = vld [vmem:[%s321 + $0x18] sm:$0xf]
        %v405 = vld [vmem:[%s321 + $0x1c] sm:$0xf]
        %v406 = vld [vmem:[%s321 + $0x20] sm:$0xf]
        %v407 = vld [vmem:[%s321 + $0x24] sm:$0xf]
        %v408 = vld [vmem:[%s321 + $0x28] sm:$0xf]
        %v409 = vld [vmem:[%s321 + $0x2c] sm:$0xf]
        %v410 = vld [vmem:[%s321 + $0x30] sm:$0xf]
        %v411 = vld [vmem:[%s321 + $0x34] sm:$0xf]
        %v412 = vld [vmem:[%s321 + $0x38] sm:$0xf]
        %v413 = vld [vmem:[%s321 + $0x3c] sm:$0xf]
        %v430 = vunpack.c.l.b16 %v382
        %v431 = vunpack.c.l.b16 %v383
        %v432 = vunpack.c.l.b16 %v384
        %v433 = vunpack.c.l.b16 %v385
        %v434 = vunpack.c.l.b16 %v386
        %v435 = vunpack.c.l.b16 %v387
        %v436 = vunpack.c.l.b16 %v388
        %v437 = vunpack.c.l.b16 %v389
        %v438 = vunpack.c.l.b16 %v390
        %v439 = vunpack.c.l.b16 %v391
        %v440 = vunpack.c.l.b16 %v392
        %v441 = vunpack.c.l.b16 %v393
        %v442 = vunpack.c.l.b16 %v394
        %v443 = vunpack.c.l.b16 %v395
        %v444 = vunpack.c.l.b16 %v396
        %v445 = vunpack.c.l.b16 %v397
        %v446 = vpack.c.b16 %v431, %v430
        %v447 = vpack.c.b16 %v433, %v432
        %v448 = vpack.c.b16 %v435, %v434
        %v449 = vpack.c.b16 %v437, %v436
        %v450 = vpack.c.b16 %v439, %v438
        %v451 = vpack.c.b16 %v441, %v440
        %v452 = vpack.c.b16 %v443, %v442
        %v453 = vpack.c.b16 %v445, %v444
        %v478 = vunpack.c.l.b16 %v398
        %v479 = vunpack.c.l.b16 %v399
        %v480 = vunpack.c.l.b16 %v400
        %v481 = vunpack.c.l.b16 %v401
        %v482 = vunpack.c.l.b16 %v402
        %v483 = vunpack.c.l.b16 %v403
        %v484 = vunpack.c.l.b16 %v404
        %v485 = vunpack.c.l.b16 %v405
        %v486 = vunpack.c.l.b16 %v406
        %v487 = vunpack.c.l.b16 %v407
        %v488 = vunpack.c.l.b16 %v408
        %v489 = vunpack.c.l.b16 %v409
        %v490 = vunpack.c.l.b16 %v410
        %v491 = vunpack.c.l.b16 %v411
        %v492 = vunpack.c.l.b16 %v412
        %v493 = vunpack.c.l.b16 %v413
        %v494 = vpack.c.b16 %v479, %v478
        %v495 = vpack.c.b16 %v481, %v480
        %v496 = vpack.c.b16 %v483, %v482
        %v497 = vpack.c.b16 %v485, %v484
        %v498 = vpack.c.b16 %v487, %v486
        %v499 = vpack.c.b16 %v489, %v488
        %v500 = vpack.c.b16 %v491, %v490
        %v501 = vpack.c.b16 %v493, %v492
        %510 = vmatpush.bf16.msra.mxu0 %v501
        %511 = vmatpush.bf16.msra.mxu0 %v500
        %512 = vmatpush.bf16.msra.mxu0 %v499
        %513 = vmatpush.bf16.msra.mxu0 %v498
        %514 = vmatpush.bf16.msra.mxu0 %v497
        %515 = vmatpush.bf16.msra.mxu0 %v496
        %516 = vmatpush.bf16.msra.mxu0 %v495
        %517 = vmatpush.bf16.msra.mxu0 %v494
        %518 = vmatmul.bf16.gmra.mxu0 %v446
        %v519 = vpop.f32.mrf.mxu0
        %v520 = vadd.f32 0.0, %v519
        %v521 = vpop.f32.mrf.mxu0
        %v522 = vadd.f32 0.0, %v521
        %523 = vmatmul.bf16.gmra.mxu0 %v447
        %v524 = vpop.f32.mrf.mxu0
        %v525 = vadd.f32 0.0, %v524
        %v526 = vpop.f32.mrf.mxu0
        %v527 = vadd.f32 0.0, %v526
        %528 = vmatmul.bf16.gmra.mxu0 %v448
        %v529 = vpop.f32.mrf.mxu0
        %v530 = vadd.f32 0.0, %v529
        %v531 = vpop.f32.mrf.mxu0
        %v532 = vadd.f32 0.0, %v531
        %533 = vmatmul.bf16.gmra.mxu0 %v449
        %v534 = vpop.f32.mrf.mxu0
        %v535 = vadd.f32 0.0, %v534
        %v536 = vpop.f32.mrf.mxu0
        %v537 = vadd.f32 0.0, %v536
        %538 = vmatmul.bf16.gmra.mxu0 %v450
        %v539 = vpop.f32.mrf.mxu0
        %v540 = vadd.f32 0.0, %v539
        %v541 = vpop.f32.mrf.mxu0
        %v542 = vadd.f32 0.0, %v541
        %543 = vmatmul.bf16.gmra.mxu0 %v451
        %v544 = vpop.f32.mrf.mxu0
        %v545 = vadd.f32 0.0, %v544
        %v546 = vpop.f32.mrf.mxu0
        %v547 = vadd.f32 0.0, %v546
        %548 = vmatmul.bf16.gmra.mxu0 %v452
        %v549 = vpop.f32.mrf.mxu0
        %v550 = vadd.f32 0.0, %v549
        %v551 = vpop.f32.mrf.mxu0
        %v552 = vadd.f32 0.0, %v551
        %553 = vmatmul.bf16.gmra.mxu0 %v453
        %v554 = vpop.f32.mrf.mxu0
        %v555 = vadd.f32 0.0, %v554
        %v556 = vpop.f32.mrf.mxu0
        %v557 = vadd.f32 0.0, %v556
        %558 = vdwg.mxu0
        %v559 = vadd.f32 %v366, %v520
        %v560 = vadd.f32 %v367, %v522
        %v561 = vadd.f32 %v368, %v525
        %v562 = vadd.f32 %v369, %v527
        %v563 = vadd.f32 %v370, %v530
        %v564 = vadd.f32 %v371, %v532
        %v565 = vadd.f32 %v372, %v535
        %v566 = vadd.f32 %v373, %v537
        %v567 = vadd.f32 %v374, %v540
        %v568 = vadd.f32 %v375, %v542
        %v569 = vadd.f32 %v376, %v545
        %v570 = vadd.f32 %v377, %v547
        %v571 = vadd.f32 %v378, %v550
        %v572 = vadd.f32 %v379, %v552
        %v573 = vadd.f32 %v380, %v555
        %v574 = vadd.f32 %v381, %v557
        %575 = vst [vmem:[%s332] sm:$0xff] %v559
        %576 = vst [vmem:[%s332 + $0x8] sm:$0xff] %v560
        %577 = vst [vmem:[%s332 + $0x10] sm:$0xff] %v561
        %578 = vst [vmem:[%s332 + $0x18] sm:$0xff] %v562
        %579 = vst [vmem:[%s332 + $0x20] sm:$0xff] %v563
        %580 = vst [vmem:[%s332 + $0x28] sm:$0xff] %v564
        %581 = vst [vmem:[%s332 + $0x30] sm:$0xff] %v565
        %582 = vst [vmem:[%s332 + $0x38] sm:$0xff] %v566
        %583 = vst [vmem:[%s332 + $0x40] sm:$0xff] %v567
        %584 = vst [vmem:[%s332 + $0x48] sm:$0xff] %v568
        %585 = vst [vmem:[%s332 + $0x50] sm:$0xff] %v569
        %586 = vst [vmem:[%s332 + $0x58] sm:$0xff] %v570
        %587 = vst [vmem:[%s332 + $0x60] sm:$0xff] %v571
        %588 = vst [vmem:[%s332 + $0x68] sm:$0xff] %v572
        %589 = vst [vmem:[%s332 + $0x70] sm:$0xff] %v573
        %590 = vst [vmem:[%s332 + $0x78] sm:$0xff] %v574
      $region44: #{egl_rel_graph_conv.1} parent=35 // pred_fallthru
        _
      %p591 = scmp.eq.s32.totalorder %s29, 3
      // Predicated region
      $region45: #{egl_rel_graph_conv.1} parent=35 // pred_check
        %p592 = pneg %p591
      $region46: #{egl_rel_graph_conv.1} parent=35 // pred_check_branch
        %594 = sbr.rel (%p592) target = $region48
      $region47: #{egl_rel_graph_conv.1} parent=35 // pred_region
        %v595 = vld [vmem:[%s332] sm:$0xff]
        %v596 = vld [vmem:[%s332 + $0x8] sm:$0xff]
        %v597 = vld [vmem:[%s332 + $0x10] sm:$0xff]
        %v598 = vld [vmem:[%s332 + $0x18] sm:$0xff]
        %v599 = vld [vmem:[%s332 + $0x20] sm:$0xff]
        %v600 = vld [vmem:[%s332 + $0x28] sm:$0xff]
        %v601 = vld [vmem:[%s332 + $0x30] sm:$0xff]
        %v602 = vld [vmem:[%s332 + $0x38] sm:$0xff]
        %v603 = vld [vmem:[%s332 + $0x40] sm:$0xff]
        %v604 = vld [vmem:[%s332 + $0x48] sm:$0xff]
        %v605 = vld [vmem:[%s332 + $0x50] sm:$0xff]
        %v606 = vld [vmem:[%s332 + $0x58] sm:$0xff]
        %v607 = vld [vmem:[%s332 + $0x60] sm:$0xff]
        %v608 = vld [vmem:[%s332 + $0x68] sm:$0xff]
        %v609 = vld [vmem:[%s332 + $0x70] sm:$0xff]
        %v610 = vld [vmem:[%s332 + $0x78] sm:$0xff]
        %v611 = vld [vmem:[%s326] sm:$0xff]
        %v612 = vld [vmem:[%s326 + $0x8] sm:$0xff]
        %v613 = vld [vmem:[%s326 + $0x10] sm:$0xff]
        %v614 = vld [vmem:[%s326 + $0x18] sm:$0xff]
        %v615 = vld [vmem:[%s326 + $0x20] sm:$0xff]
        %v616 = vld [vmem:[%s326 + $0x28] sm:$0xff]
        %v617 = vld [vmem:[%s326 + $0x30] sm:$0xff]
        %v618 = vld [vmem:[%s326 + $0x38] sm:$0xff]
        %v619 = vld [vmem:[%s326 + $0x40] sm:$0xff]
        %v620 = vld [vmem:[%s326 + $0x48] sm:$0xff]
        %v621 = vld [vmem:[%s326 + $0x50] sm:$0xff]
        %v622 = vld [vmem:[%s326 + $0x58] sm:$0xff]
        %v623 = vld [vmem:[%s326 + $0x60] sm:$0xff]
        %v624 = vld [vmem:[%s326 + $0x68] sm:$0xff]
        %v625 = vld [vmem:[%s326 + $0x70] sm:$0xff]
        %v626 = vld [vmem:[%s326 + $0x78] sm:$0xff]
        %628 = vset.pattern.permute.xlu0 0
        %629 = vperm.xlu0 %628, %v611
        %v630 = vpop.permute.xlu0 %629
        %633 = vset.pattern.permute.xlu0 0
        %634 = vperm.xlu0 %633, %v612
        %v635 = vpop.permute.xlu0 %634
        %638 = vset.pattern.permute.xlu0 0
        %639 = vperm.xlu0 %638, %v613
        %v640 = vpop.permute.xlu0 %639
        %643 = vset.pattern.permute.xlu0 0
        %644 = vperm.xlu0 %643, %v614
        %v645 = vpop.permute.xlu0 %644
        %648 = vset.pattern.permute.xlu0 0
        %649 = vperm.xlu0 %648, %v615
        %v650 = vpop.permute.xlu0 %649
        %653 = vset.pattern.permute.xlu0 0
        %654 = vperm.xlu0 %653, %v616
        %v655 = vpop.permute.xlu0 %654
        %658 = vset.pattern.permute.xlu0 0
        %659 = vperm.xlu0 %658, %v617
        %v660 = vpop.permute.xlu0 %659
        %663 = vset.pattern.permute.xlu0 0
        %664 = vperm.xlu0 %663, %v618
        %v665 = vpop.permute.xlu0 %664
        %668 = vset.pattern.permute.xlu0 0
        %669 = vperm.xlu0 %668, %v619
        %v670 = vpop.permute.xlu0 %669
        %673 = vset.pattern.permute.xlu0 0
        %674 = vperm.xlu0 %673, %v620
        %v675 = vpop.permute.xlu0 %674
        %678 = vset.pattern.permute.xlu0 0
        %679 = vperm.xlu0 %678, %v621
        %v680 = vpop.permute.xlu0 %679
        %683 = vset.pattern.permute.xlu0 0
        %684 = vperm.xlu0 %683, %v622
        %v685 = vpop.permute.xlu0 %684
        %688 = vset.pattern.permute.xlu0 0
        %689 = vperm.xlu0 %688, %v623
        %v690 = vpop.permute.xlu0 %689
        %693 = vset.pattern.permute.xlu0 0
        %694 = vperm.xlu0 %693, %v624
        %v695 = vpop.permute.xlu0 %694
        %698 = vset.pattern.permute.xlu0 0
        %699 = vperm.xlu0 %698, %v625
        %v700 = vpop.permute.xlu0 %699
        %703 = vset.pattern.permute.xlu0 0
        %704 = vperm.xlu0 %703, %v626
        %v705 = vpop.permute.xlu0 %704
        %v707 = vmul.f32 %v595, %v630
        %v708 = vmul.f32 %v596, %v635
        %v709 = vmul.f32 %v597, %v640
        %v710 = vmul.f32 %v598, %v645
        %v711 = vmul.f32 %v599, %v650
        %v712 = vmul.f32 %v600, %v655
        %v713 = vmul.f32 %v601, %v660
        %v714 = vmul.f32 %v602, %v665
        %v715 = vmul.f32 %v603, %v670
        %v716 = vmul.f32 %v604, %v675
        %v717 = vmul.f32 %v605, %v680
        %v718 = vmul.f32 %v606, %v685
        %v719 = vmul.f32 %v607, %v690
        %v720 = vmul.f32 %v608, %v695
        %v721 = vmul.f32 %v609, %v700
        %v722 = vmul.f32 %v610, %v705
        %v723 = vld [vmem:[%s4] sm:$0x1]
        %v725 = vperm.slane %v723, 0
        %v727 = vadd.f32 %v707, %v725
        %v728 = vadd.f32 %v708, %v725
        %v729 = vadd.f32 %v709, %v725
        %v730 = vadd.f32 %v710, %v725
        %v731 = vadd.f32 %v711, %v725
        %v732 = vadd.f32 %v712, %v725
        %v733 = vadd.f32 %v713, %v725
        %v734 = vadd.f32 %v714, %v725
        %v735 = vadd.f32 %v715, %v725
        %v736 = vadd.f32 %v716, %v725
        %v737 = vadd.f32 %v717, %v725
        %v738 = vadd.f32 %v718, %v725
        %v739 = vadd.f32 %v719, %v725
        %v740 = vadd.f32 %v720, %v725
        %v741 = vadd.f32 %v721, %v725
        %v742 = vadd.f32 %v722, %v725
        %v743 = vmax.f32 %v727, 0.0
        %v744 = vmax.f32 %v728, 0.0
        %v745 = vmax.f32 %v729, 0.0
        %v746 = vmax.f32 %v730, 0.0
        %v747 = vmax.f32 %v731, 0.0
        %v748 = vmax.f32 %v732, 0.0
        %v749 = vmax.f32 %v733, 0.0
        %v750 = vmax.f32 %v734, 0.0
        %v751 = vmax.f32 %v735, 0.0
        %v752 = vmax.f32 %v736, 0.0
        %v753 = vmax.f32 %v737, 0.0
        %v754 = vmax.f32 %v738, 0.0
        %v755 = vmax.f32 %v739, 0.0
        %v756 = vmax.f32 %v740, 0.0
        %v757 = vmax.f32 %v741, 0.0
        %v758 = vmax.f32 %v742, 0.0
        %759 = vst [vmem:[%s332] sm:$0xff] %v743
        %760 = vst [vmem:[%s332 + $0x8] sm:$0xff] %v744
        %761 = vst [vmem:[%s332 + $0x10] sm:$0xff] %v745
        %762 = vst [vmem:[%s332 + $0x18] sm:$0xff] %v746
        %763 = vst [vmem:[%s332 + $0x20] sm:$0xff] %v747
        %764 = vst [vmem:[%s332 + $0x28] sm:$0xff] %v748
        %765 = vst [vmem:[%s332 + $0x30] sm:$0xff] %v749
        %766 = vst [vmem:[%s332 + $0x38] sm:$0xff] %v750
        %767 = vst [vmem:[%s332 + $0x40] sm:$0xff] %v751
        %768 = vst [vmem:[%s332 + $0x48] sm:$0xff] %v752
        %769 = vst [vmem:[%s332 + $0x50] sm:$0xff] %v753
        %770 = vst [vmem:[%s332 + $0x58] sm:$0xff] %v754
        %771 = vst [vmem:[%s332 + $0x60] sm:$0xff] %v755
        %772 = vst [vmem:[%s332 + $0x68] sm:$0xff] %v756
        %773 = vst [vmem:[%s332 + $0x70] sm:$0xff] %v757
        %774 = vst [vmem:[%s332 + $0x78] sm:$0xff] %v758
      $region48: #{egl_rel_graph_conv.1} parent=35 // pred_fallthru
        _
      %s775 = smul.u32 16, %s28
      %p776 = scmp.lt.s32.totalorder %s775, 15
      %s777 = scalar_select %p776, %s775, 15
      %s778 = smul.addr %s777, 8
      %s779 = scalar_lea.vmem %s5, %s778
      // Predicated region
      $region49: #{egl_rel_graph_conv.1} parent=35 // pred_check
        %p780 = pneg %p171
      $region50: #{egl_rel_graph_conv.1} parent=35 // pred_check_branch
        %782 = sbr.rel (%p780) target = $region52
      $region51: #{egl_rel_graph_conv.1} parent=35 // pred_region
        %s783 = smul.u32 16, %s28
      $region52: #{egl_rel_graph_conv.1} parent=35 // pred_fallthru
        _
      // Predicated region
      $region53: #{egl_rel_graph_conv.1} parent=35 // pred_check
        %p784 = pneg %p171
      $region54: #{egl_rel_graph_conv.1} parent=35 // pred_check_branch
        %786 = sbr.rel (%p784) target = $region56
      $region55: #{egl_rel_graph_conv.1} parent=35 // pred_region
        %s787 = smul.u32 16, %s28
        %p788 = scmp.lt.s32.totalorder %s787, 15
        %s789 = scalar_select %p788, %s787, 15
        %s790 = smul.addr %s789, 8
        %s791 = scalar_lea.vmem %s5, %s790
      $region56: #{egl_rel_graph_conv.1} parent=35 // pred_fallthru
        _
    $region36: #{egl_rel_graph_conv.1} parent=5 // pred_fallthru
      _
    %p792 = scmp.le.s32.totalorder 2, %s19
    // Predicated region
    $region57: #{egl_rel_graph_conv.1} parent=5 // pred_check
      %p793 = pneg %p792
    $region58: #{egl_rel_graph_conv.1} parent=5 // pred_check_branch
      %795 = sbr.rel (%p793) target = $region60
    $region59: #{egl_rel_graph_conv.1} parent=5 // pred_region
      %s796 = ssub.s32 %s19, 2
    $region60: #{egl_rel_graph_conv.1} parent=5 // pred_fallthru
      _
  $region6: #{egl_rel_graph_conv.1} parent=0 // loop_footer
    %s23 = sadd.s32 1, %s19
  $region7: #{egl_rel_graph_conv.1} parent=0 // loop_footer_branch
    %18 = sbr.rel target = $region3
  $region8: #{egl_rel_graph_conv.1} parent=0 // loop_exit
    _

</llo_original>
